<compile_context>
chip_gen: v7x
topology: tpu7x:2x2x1
jax: 0.10.0
libtpu: 0.0.40
codegen_flags: <defaults>
</compile_context>

<pallas_src>
import functools

import jax
import jax.numpy as jnp
from jax.experimental import pallas as pl
from jax.experimental.pallas import tpu as pltpu


EXPANSION = 4
BN_EPS = 1e-5
VMEM_LIMIT = 32 * 1024 * 1024     # explicit scoped-VMEM budget (safe on v5e/v6e/v7x)
PW_ROW_TILE = 512                 # pointwise M tile (measured ~85% of HBM roofline)
CONV_MAX_ROW_TILE = 8             # output rows per 3x3-conv grid step


def _round_up(x, m):
    return ((x + m - 1) // m) * m


# --------------------------------------------------------------------------
# Pallas kernels
# --------------------------------------------------------------------------
def _pw_bias_relu_kernel(x_ref, w_ref, b_ref, o_ref):
    # x: (tm, Cin) bf16, w: (Cin, Cout) bf16 (BN scale folded), b: (1, Cout) f32
    y = jnp.dot(x_ref[...], w_ref[...], preferred_element_type=jnp.float32)
    o_ref[...] = jnp.maximum(y + b_ref[...], 0.0).astype(o_ref.dtype)


def _pw_bias_add_relu_kernel(x_ref, w_ref, b_ref, res_ref, o_ref):
    # fused: 1x1 conv + bias + residual add + relu
    y = jnp.dot(x_ref[...], w_ref[...], preferred_element_type=jnp.float32)
    y = y + b_ref[...] + res_ref[...].astype(jnp.float32)
    o_ref[...] = jnp.maximum(y, 0.0).astype(o_ref.dtype)


def _conv3x3_bias_relu_kernel(body_ref, halo_ref, w_ref, b_ref, o_ref, *,
                              th, th_in, stride):
    # body_ref: (1, BH, Wp, C)   -- BH = th*stride padded-input rows for this tile
    # halo_ref: (1, 2,  Wp, C)   -- the (up to) 2 extra rows below the body block
    # w_ref:    (9, C, Cout)     -- block-diagonal dense weights, BN scale folded, bf16
    # b_ref:    (1, Cout) f32
    # o_ref:    (1, th, Wo, Cout)
    C = body_ref.shape[3]
    Wo, Cout = o_ref.shape[2], o_ref.shape[3]

    # (th_in, Wp, C) input window for this row tile (concat along untiled leading dim).
    window = jnp.concatenate([body_ref[0], halo_ref[0]], axis=0)[:th_in]

    if stride == 1:
        acc = jnp.zeros((th * Wo, Cout), jnp.float32)
        for kh in range(3):
            for kw in range(3):
                patch = window[kh:kh + th, kw:kw + Wo, :].reshape(th * Wo, C)
                acc = acc + jnp.dot(patch, w_ref[kh * 3 + kw],
                                    preferred_element_type=jnp.float32)
        y = jnp.maximum(acc + b_ref[...], 0.0)
        o_ref[...] = y.reshape(1, th, Wo, Cout).astype(o_ref.dtype)
    else:
        # Strided conv: compute only the strided output, one output row at a time
        # (all indices static), decimating columns with a strided slice.
        # TODO(synk): this path is not exercised by the module-level test because the
        #             reference module needs an external `downsample` when stride > 1.
        for r in range(th):
            acc = jnp.zeros((Wo, Cout), jnp.float32)
            for kh in range(3):
                row = window[r * stride + kh]                       # (Wp, C)
                for kw in range(3):
                    cols = row[kw:kw + (Wo - 1) * stride + 1:stride, :]   # (Wo, C)
                    acc = acc + jnp.dot(cols, w_ref[kh * 3 + kw],
                                        preferred_element_type=jnp.float32)
            y = jnp.maximum(acc + b_ref[...], 0.0)
            o_ref[0, r] = y.astype(o_ref.dtype)


# --------------------------------------------------------------------------
# Pallas wrappers
# --------------------------------------------------------------------------
def pointwise_bn_relu(x2d, w, bias, residual=None, out_dtype=None):
    """Fused 1x1 conv (matmul, BN-scale pre-folded) + bias + (residual add) + relu."""
    M, Cin = x2d.shape
    Cout = w.shape[1]
    out_dtype = out_dtype if out_dtype is not None else x2d.dtype

    tm = PW_ROW_TILE
    if M < tm:
        tm = _round_up(M, 8)
    Mp = _round_up(M, tm)
    pad = Mp - M
    xp = jnp.pad(x2d, ((0, pad), (0, 0))) if pad else x2d
    b2 = bias.reshape(1, Cout).astype(jnp.float32)

    in_specs = [
        pl.BlockSpec((tm, Cin), lambda i: (i, 0)),
        pl.BlockSpec((Cin, Cout), lambda i: (0, 0)),
        pl.BlockSpec((1, Cout), lambda i: (0, 0)),
    ]
    args = [xp, w, b2]
    kernel = _pw_bias_relu_kernel
    if residual is not None:
        resp = jnp.pad(residual, ((0, pad), (0, 0))) if pad else residual
        in_specs.append(pl.BlockSpec((tm, Cout), lambda i: (i, 0)))
        args.append(resp)
        kernel = _pw_bias_add_relu_kernel

    out = pl.pallas_call(
        kernel,
        out_shape=jax.ShapeDtypeStruct((Mp, Cout), out_dtype),
        grid=(Mp // tm,),
        in_specs=in_specs,
        out_specs=pl.BlockSpec((tm, Cout), lambda i: (i, 0)),
        compiler_params=pltpu.CompilerParams(
            dimension_semantics=("parallel",),
            vmem_limit_bytes=VMEM_LIMIT),
    )(*args)
    return out[:M] if pad else out


def _pick_row_tile(Ho, stride, max_rows=CONV_MAX_ROW_TILE):
    """Largest output-row tile <= max_rows that divides Ho (even if stride==1 so the
    2-row halo block starts on a block boundary)."""
    for th in range(min(Ho, max_rows), 0, -1):
        if Ho % th == 0 and (stride > 1 or th % 2 == 0):
            return th
    return None


def conv3x3_bn_relu(x_nhwc, w_dense, bias, stride):
    """Fused grouped 3x3 conv (pad=1, block-diagonal dense weights, BN-scale folded)
    + bias + relu. Row-tiled: grid=(N, Ho//TH) with a separate 2-row halo input block."""
    assert stride in (1, 2), "ResNe(X)t bottlenecks only use stride 1 or 2"
    N, H, W, C = x_nhwc.shape
    Cout = w_dense.shape[2]
    Ho = (H - 1) // stride + 1
    Wo = (W - 1) // stride + 1

    x_pad = jnp.pad(x_nhwc, ((0, 0), (1, 1), (1, 1), (0, 0)))
    Hp, Wp = H + 2, W + 2

    th = _pick_row_tile(Ho, stride)
    if th is None:
        # Fallback (e.g. odd tiny Ho): whole padded image per grid step, dummy halo.
        th, bh = Ho, Hp
        halo_map = lambda n, t: (n, 0, 0, 0)
    else:
        bh = th * stride
        hb = bh // 2
        halo_map = lambda n, t: (n, t * hb + hb, 0, 0)    # 2 rows just below the body
    th_in = (th - 1) * stride + 3
    n_t = Ho // th

    kernel = functools.partial(_conv3x3_bias_relu_kernel,
                               th=th, th_in=th_in, stride=stride)
    bias2 = bias.reshape(1, Cout).astype(jnp.float32)

    return pl.pallas_call(
        kernel,
        out_shape=jax.ShapeDtypeStruct((N, Ho, Wo, Cout), x_nhwc.dtype),
        grid=(N, n_t),
        in_specs=[
            pl.BlockSpec((1, bh, Wp, C), lambda n, t: (n, t, 0, 0)),
            pl.BlockSpec((1, 2, Wp, C), halo_map),
            pl.BlockSpec(w_dense.shape, lambda n, t: (0, 0, 0)),
            pl.BlockSpec((1, Cout), lambda n, t: (0, 0)),
        ],
        out_specs=pl.BlockSpec((1, th, Wo, Cout), lambda n, t: (n, t, 0, 0)),
        compiler_params=pltpu.CompilerParams(
            dimension_semantics=("parallel", "parallel"),
            vmem_limit_bytes=VMEM_LIMIT),
    )(x_pad, x_pad, w_dense, bias2)


# --------------------------------------------------------------------------
# Bottleneck block (param init + forward)
# --------------------------------------------------------------------------
def init_bottleneck_params(key, inplanes, planes, stride=1, groups=1, base_width=64):
    width = int(planes * (base_width / 64.0)) * groups
    outp = planes * EXPANSION
    ks = jax.random.split(key, 6)

    def conv_w(k, shape):
        fan_in = shape[1] * shape[2] * shape[3]
        return jax.random.normal(k, shape, jnp.float32) / jnp.sqrt(float(fan_in))

    def bn_p(k, c):
        k1, k2, k3, k4 = jax.random.split(k, 4)
        return dict(
            gamma=jax.random.uniform(k1, (c,), jnp.float32, 0.5, 1.5),
            beta=jax.random.normal(k2, (c,), jnp.float32) * 0.1,
            mean=jax.random.normal(k3, (c,), jnp.float32) * 0.1,
            var=jax.random.uniform(k4, (c,), jnp.float32, 0.5, 1.5),
        )

    return dict(
        w1=conv_w(ks[0], (width, inplanes, 1, 1)), bn1=bn_p(ks[1], width),
        w2=conv_w(ks[2], (width, width // groups, 3, 3)), bn2=bn_p(ks[3], width),
        w3=conv_w(ks[4], (outp, width, 1, 1)), bn3=bn_p(ks[5], outp),
        stride=stride, groups=groups, width=width, outp=outp,
    )


def bottleneck_forward(params, x_nchw, identity=None, compute_dtype=jnp.bfloat16):
    """Bottleneck forward. `identity` (NCHW) plays the role of `downsample(x)` when the
    external downsample module is needed (stride != 1 or inplanes != planes*expansion)."""
    stride, groups = params["stride"], params["groups"]
    width, outp = params["width"], params["outp"]
    N, Cin, H, W = x_nchw.shape

    def fold(bn):
        s = bn["gamma"] / jnp.sqrt(bn["var"] + BN_EPS)
        return s, bn["beta"] - bn["mean"] * s

    s1, b1 = fold(params["bn1"])
    s2, b2 = fold(params["bn2"])
    s3, b3 = fold(params["bn3"])

    x = jnp.transpose(x_nchw, (0, 2, 3, 1)).astype(compute_dtype)   # NCHW -> NHWC, bf16

    # --- conv1 (1x1) + bn1 + relu : BN scale folded into W, bf16 matmul operands ---
    w1 = (params["w1"][:, :, 0, 0].T * s1[None, :]).astype(compute_dtype)   # (Cin, width)
    out = pointwise_bn_relu(x.reshape(N * H * W, Cin), w1, b1)
    out = out.reshape(N, H, W, width)

    # --- conv2 (grouped 3x3, stride) + bn2 + relu ---
    # Block-diagonal dense weight: for width*Cout up to ~G*128^2 this beats per-group
    # tiny matmuls outright on the 128/256-wide MXU (each small matmul still costs a
    # full MXU pass).  TODO(synk): for very wide layers (width*Cout >> G*16384) a
    # per-group batched formulation would save MXU passes.
    cig = cog = width // groups
    w2 = params["w2"].reshape(groups, cog, cig, 3, 3)
    w2 = jnp.transpose(w2, (3, 4, 0, 2, 1)).reshape(9, groups, cig, cog)   # (9,G,cig,cog)
    w_dense = jnp.zeros((9, width, width), params["w2"].dtype)
    for g in range(groups):
        w_dense = w_dense.at[:, g * cig:(g + 1) * cig,
                             g * cog:(g + 1) * cog].set(w2[:, g])
    w_dense = (w_dense * s2[None, None, :]).astype(compute_dtype)
    out = conv3x3_bn_relu(out, w_dense, b2, stride)
    Ho, Wo = out.shape[1], out.shape[2]

    # --- conv3 (1x1) + bn3 + residual add + relu ---
    if identity is None:
        if stride != 1 or Cin != outp:
            raise NotImplementedError(
                "identity path requires an external `downsample` when stride != 1 or "
                "inplanes != planes*expansion; pass its output via `identity=`.")
        identity_nhwc = x
    else:
        identity_nhwc = jnp.transpose(identity, (0, 2, 3, 1)).astype(compute_dtype)
    id2d = identity_nhwc.reshape(N * Ho * Wo, outp)

    w3 = (params["w3"][:, :, 0, 0].T * s3[None, :]).astype(compute_dtype)   # (width, outp)
    out = pointwise_bn_relu(out.reshape(N * Ho * Wo, width), w3, b3,
                            residual=id2d, out_dtype=jnp.float32)
    out = out.reshape(N, Ho, Wo, outp)
    return jnp.transpose(out, (0, 3, 1, 2))                          # NHWC -> NCHW


# --------------------------------------------------------------------------
# Pure-JAX reference (NCHW, PyTorch semantics, f32) for verification
# --------------------------------------------------------------------------
def bottleneck_reference(params, x):
    def conv(v, w, stride, pad, groups=1):
        return jax.lax.conv_general_dilated(
            v, w, (stride, stride), ((pad, pad), (pad, pad)),
            dimension_numbers=("NCHW", "OIHW", "NCHW"),
            feature_group_count=groups)

    def bn(v, p):
        s = p["gamma"] / jnp.sqrt(p["var"] + BN_EPS)
        b = p["beta"] - p["mean"] * s
        return v * s[None, :, None, None] + b[None, :, None, None]

    relu = lambda v: jnp.maximum(v, 0.0)
    out = relu(bn(conv(x, params["w1"], 1, 0), params["bn1"]))
    out = relu(bn(conv(out, params["w2"], params["stride"], 1, params["groups"]),
                  params["bn2"]))
    out = bn(conv(out, params["w3"], 1, 0), params["bn3"])
    return relu(out + x)


if __name__ == "__main__":
    key = jax.random.PRNGKey(0)

    # bf16 matmul operands with f32 accumulation -> tolerances sized for bf16.
    ATOL, RTOL = 1e-1, 5e-2

    # config 1: inplanes == planes*expansion so the identity path applies;
    #           groups=2, 16x16 spatial -> exercises multi-row-tile conv grid.
    # config 2: groups=4, 8x8 spatial, single-tile paths.
    configs = [
        dict(inplanes=32, planes=8, stride=1, groups=2, base_width=64, N=2, H=16, W=16),
        dict(inplanes=32, planes=8, stride=1, groups=4, base_width=64, N=1, H=8, W=8),
    ]

    for i, cfg in enumerate(configs):
        kp, kx = jax.random.split(jax.random.fold_in(key, i))
        params = init_bottleneck_params(kp, cfg["inplanes"], cfg["planes"],
                                        cfg["stride"], cfg["groups"], cfg["base_width"])
        x = jax.random.normal(kx, (cfg["N"], cfg["inplanes"], cfg["H"], cfg["W"]),
                              jnp.float32)

        y = jax.block_until_ready(bottleneck_forward(params, x))
        y_ref = jax.block_until_ready(bottleneck_reference(params, x))

        assert y.shape == y_ref.shape, (y.shape, y_ref.shape)
        max_err = float(jnp.max(jnp.abs(y - y_ref)))
        assert jnp.allclose(y, y_ref, atol=ATOL, rtol=RTOL), (i, max_err)

    print("KERNEL_OK")
</pallas_src>

<mosaic_0001>
module attributes {stable_mosaic.version = 11 : i64} {
  func.func @_pw_bias_relu_kernel(%arg0: i32, %arg1: memref<512x32xbf16, #tpu.memory_space<vmem>>, %arg2: memref<32x16xbf16, #tpu.memory_space<vmem>>, %arg3: memref<1x16xf32, #tpu.memory_space<vmem>>, %arg4: memref<512x16xbf16, #tpu.memory_space<vmem>>) attributes {dimension_semantics = [#tpu.dimension_semantics<parallel>], iteration_bounds = array<i64: 1>, scalar_prefetch = 0 : i64, scratch_operands = 0 : i64, tpu.core_type = #tpu.core_type<tc>, window_params = [{transform_indices = @transform_0, window_bounds = array<i64: 512, 32>}, {pipeline_mode = #tpu.pipeline_mode<synchronous>, transform_indices = @transform_1, window_bounds = array<i64: 32, 16>}, {pipeline_mode = #tpu.pipeline_mode<synchronous>, transform_indices = @transform_2, window_bounds = array<i64: 1, 16>}, {transform_indices = @transform_3, window_bounds = array<i64: 512, 16>}]} {
    %c0 = arith.constant 0 : index
    %c0_0 = arith.constant 0 : index
    %0 = vector.load %arg1[%c0, %c0_0] : memref<512x32xbf16, #tpu.memory_space<vmem>>, vector<512x32xbf16>
    %c0_1 = arith.constant 0 : index
    %c0_2 = arith.constant 0 : index
    %1 = vector.load %arg2[%c0_1, %c0_2] : memref<32x16xbf16, #tpu.memory_space<vmem>>, vector<32x16xbf16>
    %cst = arith.constant dense<0.000000e+00> : vector<512x16xf32>
    %2 = tpu.matmul %0, %1, %cst {dimension_numbers = #tpu.dot_dimension_numbers<[1], [0], [0], [1], [0, 0, 1, 1], [], []>} : vector<512x32xbf16>, vector<32x16xbf16>, vector<512x16xf32> -> vector<512x16xf32>
    %c0_3 = arith.constant 0 : index
    %c0_4 = arith.constant 0 : index
    %3 = vector.load %arg3[%c0_3, %c0_4] : memref<1x16xf32, #tpu.memory_space<vmem>>, vector<1x16xf32>
    %4 = vector.broadcast %3 : vector<1x16xf32> to vector<512x16xf32>
    %5 = arith.addf %2, %4 : vector<512x16xf32>
    %cst_5 = arith.constant 0.000000e+00 : f32
    %6 = vector.broadcast %cst_5 : f32 to vector<512x16xf32>
    %7 = arith.maximumf %5, %6 : vector<512x16xf32>
    %8 = arith.truncf %7 : vector<512x16xf32> to vector<512x16xbf16>
    %c0_6 = arith.constant 0 : index
    %c0_7 = arith.constant 0 : index
    %9 = vector.load %arg4[%c0_6, %c0_7] : memref<512x16xbf16, #tpu.memory_space<vmem>>, vector<512x16xbf16>
    tpu.vector_store %arg4[%c0_6, %c0_7], %8 {strides = array<i32>} : memref<512x16xbf16, #tpu.memory_space<vmem>>, vector<512x16xbf16>,
    return
  }
  func.func @transform_0(%arg0: i32) -> (i32, i32) {
    %c0_i32 = arith.constant 0 : i32
    %c0_i32_0 = arith.constant 0 : i32
    return %arg0, %c0_i32 : i32, i32
  }
  func.func @transform_1(%arg0: i32) -> (i32, i32) {
    %c0_i32 = arith.constant 0 : i32
    %c0_i32_0 = arith.constant 0 : i32
    %c0_i32_1 = arith.constant 0 : i32
    return %c0_i32, %c0_i32_0 : i32, i32
  }
  func.func @transform_2(%arg0: i32) -> (i32, i32) {
    %c0_i32 = arith.constant 0 : i32
    %c0_i32_0 = arith.constant 0 : i32
    %c0_i32_1 = arith.constant 0 : i32
    return %c0_i32, %c0_i32_0 : i32, i32
  }
  func.func @transform_3(%arg0: i32) -> (i32, i32) {
    %c0_i32 = arith.constant 0 : i32
    %c0_i32_0 = arith.constant 0 : i32
    return %arg0, %c0_i32 : i32, i32
  }
}

</mosaic_0001>

<llo_original>
// kernel: tpu_custom_call.1
$region0: #{tpu_custom_call.1}
  #allocation0 [shape = 'u32[]', space=smem, size = 0x4, offset = 0x4, fixed_abs, tag = 'smem constant byte address 0x4 - core index']
  #allocation1 [shape = 'u32[144,128]{1,0:T(1,128)}', space=vmem, size = 0x12000, scoped, tag = 'internal scratch']
  %s0 = inlined_call_operand.vmem [shape: bf16[512,32], index: 0, kind: input, shape index: {}]
  %s1 = inlined_call_operand.vmem [shape: bf16[32,16], index: 1, kind: input, shape index: {}]
  %s2 = inlined_call_operand.vmem [shape: f32[1,16], index: 2, kind: input, shape index: {}]
  %s3 = inlined_call_operand.vmem [shape: bf16[512,16], index: 3, kind: output, shape index: {}]
  %s4 = sld [smem:[#allocation0]]
  $region22: #{tpu_custom_call.1} parent=0
    _
  %s6 = ssub.s32 1, %s4
  %s7 = scalar_select 0, %s6, %s4
  // Predicated region
  $region2: #{tpu_custom_call.1} parent=0 // pred_check
    _
  $region3: #{tpu_custom_call.1} parent=0 // pred_check_branch
    %9 = sbr.rel (0) target = $region5
  $region4: #{tpu_custom_call.1} parent=0 // pred_region
    _
  $region5: #{tpu_custom_call.1} parent=0 // pred_fallthru
    _
  // Predicated region
  $region6: #{tpu_custom_call.1} parent=0 // pred_check
    _
  $region7: #{tpu_custom_call.1} parent=0 // pred_check_branch
    %11 = sbr.rel (0) target = $region9
  $region8: #{tpu_custom_call.1} parent=0 // pred_region
    _
  $region9: #{tpu_custom_call.1} parent=0 // pred_fallthru
    _
  // Predicated region
  $region10: #{tpu_custom_call.1} parent=0 // pred_check
    _
  $region11: #{tpu_custom_call.1} parent=0 // pred_check_branch
    %13 = sbr.rel (0) target = $region13
  $region12: #{tpu_custom_call.1} parent=0 // pred_region
    _
  $region13: #{tpu_custom_call.1} parent=0 // pred_fallthru
    _
  %v15 = vld [vmem:[%s0] sm:$0xf]
  %v16 = vld [vmem:[%s0 + $0x4] sm:$0xf]
  %v17 = vld [vmem:[%s0 + $0x8] sm:$0xf]
  %v18 = vld [vmem:[%s0 + $0xc] sm:$0xf]
  %v19 = vld [vmem:[%s0 + $0x10] sm:$0xf]
  %v20 = vld [vmem:[%s0 + $0x14] sm:$0xf]
  %v21 = vld [vmem:[%s0 + $0x18] sm:$0xf]
  %v22 = vld [vmem:[%s0 + $0x1c] sm:$0xf]
  %v23 = vld [vmem:[%s0 + $0x20] sm:$0xf]
  %v24 = vld [vmem:[%s0 + $0x24] sm:$0xf]
  %v25 = vld [vmem:[%s0 + $0x28] sm:$0xf]
  %v26 = vld [vmem:[%s0 + $0x2c] sm:$0xf]
  %v27 = vld [vmem:[%s0 + $0x30] sm:$0xf]
  %v28 = vld [vmem:[%s0 + $0x34] sm:$0xf]
  %v29 = vld [vmem:[%s0 + $0x38] sm:$0xf]
  %v30 = vld [vmem:[%s0 + $0x3c] sm:$0xf]
  %v31 = vld [vmem:[%s0 + $0x40] sm:$0xf]
  %v32 = vld [vmem:[%s0 + $0x44] sm:$0xf]
  %v33 = vld [vmem:[%s0 + $0x48] sm:$0xf]
  %v34 = vld [vmem:[%s0 + $0x4c] sm:$0xf]
  %v35 = vld [vmem:[%s0 + $0x50] sm:$0xf]
  %v36 = vld [vmem:[%s0 + $0x54] sm:$0xf]
  %v37 = vld [vmem:[%s0 + $0x58] sm:$0xf]
  %v38 = vld [vmem:[%s0 + $0x5c] sm:$0xf]
  %v39 = vld [vmem:[%s0 + $0x60] sm:$0xf]
  %v40 = vld [vmem:[%s0 + $0x64] sm:$0xf]
  %v41 = vld [vmem:[%s0 + $0x68] sm:$0xf]
  %v42 = vld [vmem:[%s0 + $0x6c] sm:$0xf]
  %v43 = vld [vmem:[%s0 + $0x70] sm:$0xf]
  %v44 = vld [vmem:[%s0 + $0x74] sm:$0xf]
  %v45 = vld [vmem:[%s0 + $0x78] sm:$0xf]
  %v46 = vld [vmem:[%s0 + $0x7c] sm:$0xf]
  %v47 = vld [vmem:[%s0 + $0x80] sm:$0xf]
  %v48 = vld [vmem:[%s0 + $0x84] sm:$0xf]
  %v49 = vld [vmem:[%s0 + $0x88] sm:$0xf]
  %v50 = vld [vmem:[%s0 + $0x8c] sm:$0xf]
  %v51 = vld [vmem:[%s0 + $0x90] sm:$0xf]
  %v52 = vld [vmem:[%s0 + $0x94] sm:$0xf]
  %v53 = vld [vmem:[%s0 + $0x98] sm:$0xf]
  %v54 = vld [vmem:[%s0 + $0x9c] sm:$0xf]
  %v55 = vld [vmem:[%s0 + $0xa0] sm:$0xf]
  %v56 = vld [vmem:[%s0 + $0xa4] sm:$0xf]
  %v57 = vld [vmem:[%s0 + $0xa8] sm:$0xf]
  %v58 = vld [vmem:[%s0 + $0xac] sm:$0xf]
  %v59 = vld [vmem:[%s0 + $0xb0] sm:$0xf]
  %v60 = vld [vmem:[%s0 + $0xb4] sm:$0xf]
  %v61 = vld [vmem:[%s0 + $0xb8] sm:$0xf]
  %v62 = vld [vmem:[%s0 + $0xbc] sm:$0xf]
  %v63 = vld [vmem:[%s0 + $0xc0] sm:$0xf]
  %v64 = vld [vmem:[%s0 + $0xc4] sm:$0xf]
  %v65 = vld [vmem:[%s0 + $0xc8] sm:$0xf]
  %v66 = vld [vmem:[%s0 + $0xcc] sm:$0xf]
  %v67 = vld [vmem:[%s0 + $0xd0] sm:$0xf]
  %v68 = vld [vmem:[%s0 + $0xd4] sm:$0xf]
  %v69 = vld [vmem:[%s0 + $0xd8] sm:$0xf]
  %v70 = vld [vmem:[%s0 + $0xdc] sm:$0xf]
  %v71 = vld [vmem:[%s0 + $0xe0] sm:$0xf]
  %v72 = vld [vmem:[%s0 + $0xe4] sm:$0xf]
  %v73 = vld [vmem:[%s0 + $0xe8] sm:$0xf]
  %v74 = vld [vmem:[%s0 + $0xec] sm:$0xf]
  %v75 = vld [vmem:[%s0 + $0xf0] sm:$0xf]
  %v76 = vld [vmem:[%s0 + $0xf4] sm:$0xf]
  %v77 = vld [vmem:[%s0 + $0xf8] sm:$0xf]
  %v78 = vld [vmem:[%s0 + $0xfc] sm:$0xf]
  %v79 = vld [vmem:[%s1] sm:$0xf]
  %v80 = vld [vmem:[%s1 + $0x4] sm:$0xf]
  %v81 = vld [vmem:[%s1 + $0x8] sm:$0xf]
  %v82 = vld [vmem:[%s1 + $0xc] sm:$0xf]
  %v83 = vld [vmem:[%s2] sm:$0x1]
  %v85 = vlaneseq
  %v86 = vshrl.u32 %v85, 7
  %v87 = vsub.s32 0, %v86
  %v88 = vrot.slane %v83, %v87
  %v154 = vunpack.c.l.b16 %v15
  %v155 = vunpack.c.l.b16 %v16
  %v156 = vunpack.c.l.b16 %v17
  %v157 = vunpack.c.l.b16 %v18
  %v158 = vunpack.c.l.b16 %v19
  %v159 = vunpack.c.l.b16 %v20
  %v160 = vunpack.c.l.b16 %v21
  %v161 = vunpack.c.l.b16 %v22
  %v162 = vunpack.c.l.b16 %v23
  %v163 = vunpack.c.l.b16 %v24
  %v164 = vunpack.c.l.b16 %v25
  %v165 = vunpack.c.l.b16 %v26
  %v166 = vunpack.c.l.b16 %v27
  %v167 = vunpack.c.l.b16 %v28
  %v168 = vunpack.c.l.b16 %v29
  %v169 = vunpack.c.l.b16 %v30
  %v170 = vunpack.c.l.b16 %v31
  %v171 = vunpack.c.l.b16 %v32
  %v172 = vunpack.c.l.b16 %v33
  %v173 = vunpack.c.l.b16 %v34
  %v174 = vunpack.c.l.b16 %v35
  %v175 = vunpack.c.l.b16 %v36
  %v176 = vunpack.c.l.b16 %v37
  %v177 = vunpack.c.l.b16 %v38
  %v178 = vunpack.c.l.b16 %v39
  %v179 = vunpack.c.l.b16 %v40
  %v180 = vunpack.c.l.b16 %v41
  %v181 = vunpack.c.l.b16 %v42
  %v182 = vunpack.c.l.b16 %v43
  %v183 = vunpack.c.l.b16 %v44
  %v184 = vunpack.c.l.b16 %v45
  %v185 = vunpack.c.l.b16 %v46
  %v186 = vunpack.c.l.b16 %v47
  %v187 = vunpack.c.l.b16 %v48
  %v188 = vunpack.c.l.b16 %v49
  %v189 = vunpack.c.l.b16 %v50
  %v190 = vunpack.c.l.b16 %v51
  %v191 = vunpack.c.l.b16 %v52
  %v192 = vunpack.c.l.b16 %v53
  %v193 = vunpack.c.l.b16 %v54
  %v194 = vunpack.c.l.b16 %v55
  %v195 = vunpack.c.l.b16 %v56
  %v196 = vunpack.c.l.b16 %v57
  %v197 = vunpack.c.l.b16 %v58
  %v198 = vunpack.c.l.b16 %v59
  %v199 = vunpack.c.l.b16 %v60
  %v200 = vunpack.c.l.b16 %v61
  %v201 = vunpack.c.l.b16 %v62
  %v202 = vunpack.c.l.b16 %v63
  %v203 = vunpack.c.l.b16 %v64
  %v204 = vunpack.c.l.b16 %v65
  %v205 = vunpack.c.l.b16 %v66
  %v206 = vunpack.c.l.b16 %v67
  %v207 = vunpack.c.l.b16 %v68
  %v208 = vunpack.c.l.b16 %v69
  %v209 = vunpack.c.l.b16 %v70
  %v210 = vunpack.c.l.b16 %v71
  %v211 = vunpack.c.l.b16 %v72
  %v212 = vunpack.c.l.b16 %v73
  %v213 = vunpack.c.l.b16 %v74
  %v214 = vunpack.c.l.b16 %v75
  %v215 = vunpack.c.l.b16 %v76
  %v216 = vunpack.c.l.b16 %v77
  %v217 = vunpack.c.l.b16 %v78
  %v218 = vpack.c.b16 %v155, %v154
  %v219 = vpack.c.b16 %v157, %v156
  %v220 = vpack.c.b16 %v159, %v158
  %v221 = vpack.c.b16 %v161, %v160
  %v222 = vpack.c.b16 %v163, %v162
  %v223 = vpack.c.b16 %v165, %v164
  %v224 = vpack.c.b16 %v167, %v166
  %v225 = vpack.c.b16 %v169, %v168
  %v226 = vpack.c.b16 %v171, %v170
  %v227 = vpack.c.b16 %v173, %v172
  %v228 = vpack.c.b16 %v175, %v174
  %v229 = vpack.c.b16 %v177, %v176
  %v230 = vpack.c.b16 %v179, %v178
  %v231 = vpack.c.b16 %v181, %v180
  %v232 = vpack.c.b16 %v183, %v182
  %v233 = vpack.c.b16 %v185, %v184
  %v234 = vpack.c.b16 %v187, %v186
  %v235 = vpack.c.b16 %v189, %v188
  %v236 = vpack.c.b16 %v191, %v190
  %v237 = vpack.c.b16 %v193, %v192
  %v238 = vpack.c.b16 %v195, %v194
  %v239 = vpack.c.b16 %v197, %v196
  %v240 = vpack.c.b16 %v199, %v198
  %v241 = vpack.c.b16 %v201, %v200
  %v242 = vpack.c.b16 %v203, %v202
  %v243 = vpack.c.b16 %v205, %v204
  %v244 = vpack.c.b16 %v207, %v206
  %v245 = vpack.c.b16 %v209, %v208
  %v246 = vpack.c.b16 %v211, %v210
  %v247 = vpack.c.b16 %v213, %v212
  %v248 = vpack.c.b16 %v215, %v214
  %v249 = vpack.c.b16 %v217, %v216
  %v254 = vunpack.c.l.b16 %v79
  %v255 = vunpack.c.l.b16 %v80
  %v256 = vunpack.c.l.b16 %v81
  %v257 = vunpack.c.l.b16 %v82
  %v258 = vpack.c.b16 %v255, %v254
  %v259 = vpack.c.b16 %v257, %v256
  %vm262 = vcmask 261120
  %v264 = vsel %vm262, %v218, 0
  %v267 = vsel %vm262, %v219, 0
  %v270 = vsel %vm262, %v220, 0
  %v273 = vsel %vm262, %v221, 0
  %v276 = vsel %vm262, %v222, 0
  %v279 = vsel %vm262, %v223, 0
  %v282 = vsel %vm262, %v224, 0
  %v285 = vsel %vm262, %v225, 0
  %v288 = vsel %vm262, %v226, 0
  %v291 = vsel %vm262, %v227, 0
  %v294 = vsel %vm262, %v228, 0
  %v297 = vsel %vm262, %v229, 0
  %v300 = vsel %vm262, %v230, 0
  %v303 = vsel %vm262, %v231, 0
  %v306 = vsel %vm262, %v232, 0
  %v309 = vsel %vm262, %v233, 0
  %v312 = vsel %vm262, %v234, 0
  %v315 = vsel %vm262, %v235, 0
  %v318 = vsel %vm262, %v236, 0
  %v321 = vsel %vm262, %v237, 0
  %v324 = vsel %vm262, %v238, 0
  %v327 = vsel %vm262, %v239, 0
  %v330 = vsel %vm262, %v240, 0
  %v333 = vsel %vm262, %v241, 0
  %v336 = vsel %vm262, %v242, 0
  %v339 = vsel %vm262, %v243, 0
  %v342 = vsel %vm262, %v244, 0
  %v345 = vsel %vm262, %v245, 0
  %v348 = vsel %vm262, %v246, 0
  %v351 = vsel %vm262, %v247, 0
  %v354 = vsel %vm262, %v248, 0
  %v357 = vsel %vm262, %v249, 0
  %359 = vmatprep.subr.bf16.mxu0 0
  %360 = vmatpush1.bf16.msra.mxu0 %v258
  %361 = vmatprep.subr.bf16.mxu0 0
  %362 = vmatpush1.bf16.msra.mxu0 %v259
  %363 = vmatprep.subr.bf16.mxu0 0
  %364 = vmatpush1.bf16.msra.mxu0 0
  %365 = vmatprep.subr.bf16.mxu0 0
  %366 = vmatpush1.bf16.msra.mxu0 0
  %367 = vmatprep.subr.bf16.mxu0 0
  %368 = vmatpush1.bf16.msra.mxu0 0
  %369 = vmatprep.subr.bf16.mxu0 0
  %370 = vmatpush1.bf16.msra.mxu0 0
  %371 = vmatprep.subr.bf16.mxu0 0
  %372 = vmatpush1.bf16.msra.mxu0 0
  %373 = vmatprep.subr.bf16.mxu0 0
  %374 = vmatpush1.bf16.msra.mxu0 0
  %375 = vmatprep.subr.bf16.mxu0 0
  %376 = vmatpush1.bf16.msra.mxu0 0
  %377 = vmatprep.subr.bf16.mxu0 0
  %378 = vmatpush1.bf16.msra.mxu0 0
  %379 = vmatprep.subr.bf16.mxu0 0
  %380 = vmatpush1.bf16.msra.mxu0 0
  %381 = vmatprep.subr.bf16.mxu0 0
  %382 = vmatpush1.bf16.msra.mxu0 0
  %383 = vmatprep.subr.bf16.mxu0 0
  %384 = vmatpush1.bf16.msra.mxu0 0
  %385 = vmatprep.subr.bf16.mxu0 0
  %386 = vmatpush1.bf16.msra.mxu0 0
  %387 = vmatprep.subr.bf16.mxu0 0
  %388 = vmatpush1.bf16.msra.mxu0 0
  %389 = vmatprep.subr.bf16.mxu0 0
  %390 = vmatpush1.bf16.msra.mxu0 0
  %391 = vmatprep.mubr.bf16.mxu0 0
  %392 = vmatmul.mubr.bf16.gmra.mrb[0].mxu0 %v264
  %v393 = vpop.f32.mrb[0].mxu0
  %v394 = vadd.f32 %v88, %v393
  %v395 = vpop.f32.mrb[0].mxu0
  %v396 = vpop.f32.mrb[0].mxu0
  %v397 = vadd.f32 %v88, %v396
  %v398 = vpop.f32.mrb[0].mxu0
  %399 = vmatprep.mubr.bf16.mxu0 0
  %400 = vmatmul.mubr.bf16.gmra.mrb[0].mxu0 %v267
  %v401 = vpop.f32.mrb[0].mxu0
  %v402 = vadd.f32 %v88, %v401
  %v403 = vpop.f32.mrb[0].mxu0
  %v404 = vpop.f32.mrb[0].mxu0
  %v405 = vadd.f32 %v88, %v404
  %v406 = vpop.f32.mrb[0].mxu0
  %407 = vmatprep.mubr.bf16.mxu0 0
  %408 = vmatmul.mubr.bf16.gmra.mrb[0].mxu0 %v270
  %v409 = vpop.f32.mrb[0].mxu0
  %v410 = vadd.f32 %v88, %v409
  %v411 = vpop.f32.mrb[0].mxu0
  %v412 = vpop.f32.mrb[0].mxu0
  %v413 = vadd.f32 %v88, %v412
  %v414 = vpop.f32.mrb[0].mxu0
  %415 = vmatprep.mubr.bf16.mxu0 0
  %416 = vmatmul.mubr.bf16.gmra.mrb[0].mxu0 %v273
  %v417 = vpop.f32.mrb[0].mxu0
  %v418 = vadd.f32 %v88, %v417
  %v419 = vpop.f32.mrb[0].mxu0
  %v420 = vpop.f32.mrb[0].mxu0
  %v421 = vadd.f32 %v88, %v420
  %v422 = vpop.f32.mrb[0].mxu0
  %423 = vmatprep.mubr.bf16.mxu0 0
  %424 = vmatmul.mubr.bf16.gmra.mrb[0].mxu0 %v276
  %v425 = vpop.f32.mrb[0].mxu0
  %v426 = vadd.f32 %v88, %v425
  %v427 = vpop.f32.mrb[0].mxu0
  %v428 = vpop.f32.mrb[0].mxu0
  %v429 = vadd.f32 %v88, %v428
  %v430 = vpop.f32.mrb[0].mxu0
  %431 = vmatprep.mubr.bf16.mxu0 0
  %432 = vmatmul.mubr.bf16.gmra.mrb[0].mxu0 %v279
  %v433 = vpop.f32.mrb[0].mxu0
  %v434 = vadd.f32 %v88, %v433
  %v435 = vpop.f32.mrb[0].mxu0
  %v436 = vpop.f32.mrb[0].mxu0
  %v437 = vadd.f32 %v88, %v436
  %v438 = vpop.f32.mrb[0].mxu0
  %439 = vmatprep.mubr.bf16.mxu0 0
  %440 = vmatmul.mubr.bf16.gmra.mrb[0].mxu0 %v282
  %v441 = vpop.f32.mrb[0].mxu0
  %v442 = vadd.f32 %v88, %v441
  %v443 = vpop.f32.mrb[0].mxu0
  %v444 = vpop.f32.mrb[0].mxu0
  %v445 = vadd.f32 %v88, %v444
  %v446 = vpop.f32.mrb[0].mxu0
  %447 = vmatprep.mubr.bf16.mxu0 0
  %448 = vmatmul.mubr.bf16.gmra.mrb[0].mxu0 %v285
  %v449 = vpop.f32.mrb[0].mxu0
  %v450 = vadd.f32 %v88, %v449
  %v451 = vpop.f32.mrb[0].mxu0
  %v452 = vpop.f32.mrb[0].mxu0
  %v453 = vadd.f32 %v88, %v452
  %v454 = vpop.f32.mrb[0].mxu0
  %455 = vmatprep.mubr.bf16.mxu0 0
  %456 = vmatmul.mubr.bf16.gmra.mrb[0].mxu0 %v288
  %v457 = vpop.f32.mrb[0].mxu0
  %v458 = vadd.f32 %v88, %v457
  %v459 = vpop.f32.mrb[0].mxu0
  %v460 = vpop.f32.mrb[0].mxu0
  %v461 = vadd.f32 %v88, %v460
  %v462 = vpop.f32.mrb[0].mxu0
  %463 = vmatprep.mubr.bf16.mxu0 0
  %464 = vmatmul.mubr.bf16.gmra.mrb[0].mxu0 %v291
  %v465 = vpop.f32.mrb[0].mxu0
  %v466 = vadd.f32 %v88, %v465
  %v467 = vpop.f32.mrb[0].mxu0
  %v468 = vpop.f32.mrb[0].mxu0
  %v469 = vadd.f32 %v88, %v468
  %v470 = vpop.f32.mrb[0].mxu0
  %471 = vmatprep.mubr.bf16.mxu0 0
  %472 = vmatmul.mubr.bf16.gmra.mrb[0].mxu0 %v294
  %v473 = vpop.f32.mrb[0].mxu0
  %v474 = vadd.f32 %v88, %v473
  %v475 = vpop.f32.mrb[0].mxu0
  %v476 = vpop.f32.mrb[0].mxu0
  %v477 = vadd.f32 %v88, %v476
  %v478 = vpop.f32.mrb[0].mxu0
  %479 = vmatprep.mubr.bf16.mxu0 0
  %480 = vmatmul.mubr.bf16.gmra.mrb[0].mxu0 %v297
  %v481 = vpop.f32.mrb[0].mxu0
  %v482 = vadd.f32 %v88, %v481
  %v483 = vpop.f32.mrb[0].mxu0
  %v484 = vpop.f32.mrb[0].mxu0
  %v485 = vadd.f32 %v88, %v484
  %v486 = vpop.f32.mrb[0].mxu0
  %487 = vmatprep.mubr.bf16.mxu0 0
  %488 = vmatmul.mubr.bf16.gmra.mrb[0].mxu0 %v300
  %v489 = vpop.f32.mrb[0].mxu0
  %v490 = vadd.f32 %v88, %v489
  %v491 = vpop.f32.mrb[0].mxu0
  %v492 = vpop.f32.mrb[0].mxu0
  %v493 = vadd.f32 %v88, %v492
  %v494 = vpop.f32.mrb[0].mxu0
  %495 = vmatprep.mubr.bf16.mxu0 0
  %496 = vmatmul.mubr.bf16.gmra.mrb[0].mxu0 %v303
  %v497 = vpop.f32.mrb[0].mxu0
  %v498 = vadd.f32 %v88, %v497
  %v499 = vpop.f32.mrb[0].mxu0
  %v500 = vpop.f32.mrb[0].mxu0
  %v501 = vadd.f32 %v88, %v500
  %v502 = vpop.f32.mrb[0].mxu0
  %503 = vmatprep.mubr.bf16.mxu0 0
  %504 = vmatmul.mubr.bf16.gmra.mrb[0].mxu0 %v306
  %v505 = vpop.f32.mrb[0].mxu0
  %v506 = vadd.f32 %v88, %v505
  %v507 = vpop.f32.mrb[0].mxu0
  %v508 = vpop.f32.mrb[0].mxu0
  %v509 = vadd.f32 %v88, %v508
  %v510 = vpop.f32.mrb[0].mxu0
  %511 = vmatprep.mubr.bf16.mxu0 0
  %512 = vmatmul.mubr.bf16.gmra.mrb[0].mxu0 %v309
  %v513 = vpop.f32.mrb[0].mxu0
  %v514 = vadd.f32 %v88, %v513
  %v515 = vpop.f32.mrb[0].mxu0
  %v516 = vpop.f32.mrb[0].mxu0
  %v517 = vadd.f32 %v88, %v516
  %v518 = vpop.f32.mrb[0].mxu0
  %519 = vmatprep.mubr.bf16.mxu0 0
  %520 = vmatmul.mubr.bf16.gmra.mrb[0].mxu0 %v312
  %v521 = vpop.f32.mrb[0].mxu0
  %v522 = vadd.f32 %v88, %v521
  %v523 = vpop.f32.mrb[0].mxu0
  %v524 = vpop.f32.mrb[0].mxu0
  %v525 = vadd.f32 %v88, %v524
  %v526 = vpop.f32.mrb[0].mxu0
  %527 = vmatprep.mubr.bf16.mxu0 0
  %528 = vmatmul.mubr.bf16.gmra.mrb[0].mxu0 %v315
  %v529 = vpop.f32.mrb[0].mxu0
  %v530 = vadd.f32 %v88, %v529
  %v531 = vpop.f32.mrb[0].mxu0
  %v532 = vpop.f32.mrb[0].mxu0
  %v533 = vadd.f32 %v88, %v532
  %v534 = vpop.f32.mrb[0].mxu0
  %535 = vmatprep.mubr.bf16.mxu0 0
  %536 = vmatmul.mubr.bf16.gmra.mrb[0].mxu0 %v318
  %v537 = vpop.f32.mrb[0].mxu0
  %v538 = vadd.f32 %v88, %v537
  %v539 = vpop.f32.mrb[0].mxu0
  %v540 = vpop.f32.mrb[0].mxu0
  %v541 = vadd.f32 %v88, %v540
  %v542 = vpop.f32.mrb[0].mxu0
  %543 = vmatprep.mubr.bf16.mxu0 0
  %544 = vmatmul.mubr.bf16.gmra.mrb[0].mxu0 %v321
  %v545 = vpop.f32.mrb[0].mxu0
  %v546 = vadd.f32 %v88, %v545
  %v547 = vpop.f32.mrb[0].mxu0
  %v548 = vpop.f32.mrb[0].mxu0
  %v549 = vadd.f32 %v88, %v548
  %v550 = vpop.f32.mrb[0].mxu0
  %551 = vmatprep.mubr.bf16.mxu0 0
  %552 = vmatmul.mubr.bf16.gmra.mrb[0].mxu0 %v324
  %v553 = vpop.f32.mrb[0].mxu0
  %v554 = vadd.f32 %v88, %v553
  %v555 = vpop.f32.mrb[0].mxu0
  %v556 = vpop.f32.mrb[0].mxu0
  %v557 = vadd.f32 %v88, %v556
  %v558 = vpop.f32.mrb[0].mxu0
  %559 = vmatprep.mubr.bf16.mxu0 0
  %560 = vmatmul.mubr.bf16.gmra.mrb[0].mxu0 %v327
  %v561 = vpop.f32.mrb[0].mxu0
  %v562 = vadd.f32 %v88, %v561
  %v563 = vpop.f32.mrb[0].mxu0
  %v564 = vpop.f32.mrb[0].mxu0
  %v565 = vadd.f32 %v88, %v564
  %v566 = vpop.f32.mrb[0].mxu0
  %567 = vmatprep.mubr.bf16.mxu0 0
  %568 = vmatmul.mubr.bf16.gmra.mrb[0].mxu0 %v330
  %v569 = vpop.f32.mrb[0].mxu0
  %v570 = vadd.f32 %v88, %v569
  %v571 = vpop.f32.mrb[0].mxu0
  %v572 = vpop.f32.mrb[0].mxu0
  %v573 = vadd.f32 %v88, %v572
  %v574 = vpop.f32.mrb[0].mxu0
  %575 = vmatprep.mubr.bf16.mxu0 0
  %576 = vmatmul.mubr.bf16.gmra.mrb[0].mxu0 %v333
  %v577 = vpop.f32.mrb[0].mxu0
  %v578 = vadd.f32 %v88, %v577
  %v579 = vpop.f32.mrb[0].mxu0
  %v580 = vpop.f32.mrb[0].mxu0
  %v581 = vadd.f32 %v88, %v580
  %v582 = vpop.f32.mrb[0].mxu0
  %583 = vmatprep.mubr.bf16.mxu0 0
  %584 = vmatmul.mubr.bf16.gmra.mrb[0].mxu0 %v336
  %v585 = vpop.f32.mrb[0].mxu0
  %v586 = vadd.f32 %v88, %v585
  %v587 = vpop.f32.mrb[0].mxu0
  %v588 = vpop.f32.mrb[0].mxu0
  %v589 = vadd.f32 %v88, %v588
  %v590 = vpop.f32.mrb[0].mxu0
  %591 = vmatprep.mubr.bf16.mxu0 0
  %592 = vmatmul.mubr.bf16.gmra.mrb[0].mxu0 %v339
  %v593 = vpop.f32.mrb[0].mxu0
  %v594 = vadd.f32 %v88, %v593
  %v595 = vpop.f32.mrb[0].mxu0
  %v596 = vpop.f32.mrb[0].mxu0
  %v597 = vadd.f32 %v88, %v596
  %v598 = vpop.f32.mrb[0].mxu0
  %599 = vmatprep.mubr.bf16.mxu0 0
  %600 = vmatmul.mubr.bf16.gmra.mrb[0].mxu0 %v342
  %v601 = vpop.f32.mrb[0].mxu0
  %v602 = vadd.f32 %v88, %v601
  %v603 = vpop.f32.mrb[0].mxu0
  %v604 = vpop.f32.mrb[0].mxu0
  %v605 = vadd.f32 %v88, %v604
  %v606 = vpop.f32.mrb[0].mxu0
  %607 = vmatprep.mubr.bf16.mxu0 0
  %608 = vmatmul.mubr.bf16.gmra.mrb[0].mxu0 %v345
  %v609 = vpop.f32.mrb[0].mxu0
  %v610 = vadd.f32 %v88, %v609
  %v611 = vpop.f32.mrb[0].mxu0
  %v612 = vpop.f32.mrb[0].mxu0
  %v613 = vadd.f32 %v88, %v612
  %v614 = vpop.f32.mrb[0].mxu0
  %615 = vmatprep.mubr.bf16.mxu0 0
  %616 = vmatmul.mubr.bf16.gmra.mrb[0].mxu0 %v348
  %v617 = vpop.f32.mrb[0].mxu0
  %v618 = vadd.f32 %v88, %v617
  %v619 = vpop.f32.mrb[0].mxu0
  %v620 = vpop.f32.mrb[0].mxu0
  %v621 = vadd.f32 %v88, %v620
  %v622 = vpop.f32.mrb[0].mxu0
  %623 = vmatprep.mubr.bf16.mxu0 0
  %624 = vmatmul.mubr.bf16.gmra.mrb[0].mxu0 %v351
  %v625 = vpop.f32.mrb[0].mxu0
  %v626 = vadd.f32 %v88, %v625
  %v627 = vpop.f32.mrb[0].mxu0
  %v628 = vpop.f32.mrb[0].mxu0
  %v629 = vadd.f32 %v88, %v628
  %v630 = vpop.f32.mrb[0].mxu0
  %631 = vmatprep.mubr.bf16.mxu0 0
  %632 = vmatmul.mubr.bf16.gmra.mrb[0].mxu0 %v354
  %v633 = vpop.f32.mrb[0].mxu0
  %v634 = vadd.f32 %v88, %v633
  %v635 = vpop.f32.mrb[0].mxu0
  %v636 = vpop.f32.mrb[0].mxu0
  %v637 = vadd.f32 %v88, %v636
  %v638 = vpop.f32.mrb[0].mxu0
  %639 = vmatprep.mubr.bf16.mxu0 0
  %640 = vmatmul.mubr.bf16.gmra.mrb[0].mxu0 %v357
  %v641 = vpop.f32.mrb[0].mxu0
  %v642 = vadd.f32 %v88, %v641
  %v643 = vpop.f32.mrb[0].mxu0
  %v644 = vpop.f32.mrb[0].mxu0
  %v645 = vadd.f32 %v88, %v644
  %v646 = vpop.f32.mrb[0].mxu0
  %647 = vdwg.mxu0
  %v648 = vmax.f32 %v394, 0.0
  %v649 = vmax.f32 %v397, 0.0
  %v650 = vmax.f32 %v402, 0.0
  %v651 = vmax.f32 %v405, 0.0
  %v652 = vmax.f32 %v410, 0.0
  %v653 = vmax.f32 %v413, 0.0
  %v654 = vmax.f32 %v418, 0.0
  %v655 = vmax.f32 %v421, 0.0
  %v656 = vmax.f32 %v426, 0.0
  %v657 = vmax.f32 %v429, 0.0
  %v658 = vmax.f32 %v434, 0.0
  %v659 = vmax.f32 %v437, 0.0
  %v660 = vmax.f32 %v442, 0.0
  %v661 = vmax.f32 %v445, 0.0
  %v662 = vmax.f32 %v450, 0.0
  %v663 = vmax.f32 %v453, 0.0
  %v664 = vmax.f32 %v458, 0.0
  %v665 = vmax.f32 %v461, 0.0
  %v666 = vmax.f32 %v466, 0.0
  %v667 = vmax.f32 %v469, 0.0
  %v668 = vmax.f32 %v474, 0.0
  %v669 = vmax.f32 %v477, 0.0
  %v670 = vmax.f32 %v482, 0.0
  %v671 = vmax.f32 %v485, 0.0
  %v672 = vmax.f32 %v490, 0.0
  %v673 = vmax.f32 %v493, 0.0
  %v674 = vmax.f32 %v498, 0.0
  %v675 = vmax.f32 %v501, 0.0
  %v676 = vmax.f32 %v506, 0.0
  %v677 = vmax.f32 %v509, 0.0
  %v678 = vmax.f32 %v514, 0.0
  %v679 = vmax.f32 %v517, 0.0
  %v680 = vmax.f32 %v522, 0.0
  %v681 = vmax.f32 %v525, 0.0
  %v682 = vmax.f32 %v530, 0.0
  %v683 = vmax.f32 %v533, 0.0
  %v684 = vmax.f32 %v538, 0.0
  %v685 = vmax.f32 %v541, 0.0
  %v686 = vmax.f32 %v546, 0.0
  %v687 = vmax.f32 %v549, 0.0
  %v688 = vmax.f32 %v554, 0.0
  %v689 = vmax.f32 %v557, 0.0
  %v690 = vmax.f32 %v562, 0.0
  %v691 = vmax.f32 %v565, 0.0
  %v692 = vmax.f32 %v570, 0.0
  %v693 = vmax.f32 %v573, 0.0
  %v694 = vmax.f32 %v578, 0.0
  %v695 = vmax.f32 %v581, 0.0
  %v696 = vmax.f32 %v586, 0.0
  %v697 = vmax.f32 %v589, 0.0
  %v698 = vmax.f32 %v594, 0.0
  %v699 = vmax.f32 %v597, 0.0
  %v700 = vmax.f32 %v602, 0.0
  %v701 = vmax.f32 %v605, 0.0
  %v702 = vmax.f32 %v610, 0.0
  %v703 = vmax.f32 %v613, 0.0
  %v704 = vmax.f32 %v618, 0.0
  %v705 = vmax.f32 %v621, 0.0
  %v706 = vmax.f32 %v626, 0.0
  %v707 = vmax.f32 %v629, 0.0
  %v708 = vmax.f32 %v634, 0.0
  %v709 = vmax.f32 %v637, 0.0
  %v710 = vmax.f32 %v642, 0.0
  %v711 = vmax.f32 %v645, 0.0
  %v712 = vpack.c.bf16 %v649, %v648
  %v713 = vpack.c.bf16 %v651, %v650
  %v714 = vpack.c.bf16 %v653, %v652
  %v715 = vpack.c.bf16 %v655, %v654
  %v716 = vpack.c.bf16 %v657, %v656
  %v717 = vpack.c.bf16 %v659, %v658
  %v718 = vpack.c.bf16 %v661, %v660
  %v719 = vpack.c.bf16 %v663, %v662
  %v720 = vpack.c.bf16 %v665, %v664
  %v721 = vpack.c.bf16 %v667, %v666
  %v722 = vpack.c.bf16 %v669, %v668
  %v723 = vpack.c.bf16 %v671, %v670
  %v724 = vpack.c.bf16 %v673, %v672
  %v725 = vpack.c.bf16 %v675, %v674
  %v726 = vpack.c.bf16 %v677, %v676
  %v727 = vpack.c.bf16 %v679, %v678
  %v728 = vpack.c.bf16 %v681, %v680
  %v729 = vpack.c.bf16 %v683, %v682
  %v730 = vpack.c.bf16 %v685, %v684
  %v731 = vpack.c.bf16 %v687, %v686
  %v732 = vpack.c.bf16 %v689, %v688
  %v733 = vpack.c.bf16 %v691, %v690
  %v734 = vpack.c.bf16 %v693, %v692
  %v735 = vpack.c.bf16 %v695, %v694
  %v736 = vpack.c.bf16 %v697, %v696
  %v737 = vpack.c.bf16 %v699, %v698
  %v738 = vpack.c.bf16 %v701, %v700
  %v739 = vpack.c.bf16 %v703, %v702
  %v740 = vpack.c.bf16 %v705, %v704
  %v741 = vpack.c.bf16 %v707, %v706
  %v742 = vpack.c.bf16 %v709, %v708
  %v743 = vpack.c.bf16 %v711, %v710
  %v776 = vunpack.c.l.b16 %v712
  %v777 = vunpack.c.h.b16 %v712
  %v778 = vunpack.c.l.b16 %v713
  %v779 = vunpack.c.h.b16 %v713
  %v780 = vunpack.c.l.b16 %v714
  %v781 = vunpack.c.h.b16 %v714
  %v782 = vunpack.c.l.b16 %v715
  %v783 = vunpack.c.h.b16 %v715
  %v784 = vunpack.c.l.b16 %v716
  %v785 = vunpack.c.h.b16 %v716
  %v786 = vunpack.c.l.b16 %v717
  %v787 = vunpack.c.h.b16 %v717
  %v788 = vunpack.c.l.b16 %v718
  %v789 = vunpack.c.h.b16 %v718
  %v790 = vunpack.c.l.b16 %v719
  %v791 = vunpack.c.h.b16 %v719
  %v792 = vunpack.c.l.b16 %v720
  %v793 = vunpack.c.h.b16 %v720
  %v794 = vunpack.c.l.b16 %v721
  %v795 = vunpack.c.h.b16 %v721
  %v796 = vunpack.c.l.b16 %v722
  %v797 = vunpack.c.h.b16 %v722
  %v798 = vunpack.c.l.b16 %v723
  %v799 = vunpack.c.h.b16 %v723
  %v800 = vunpack.c.l.b16 %v724
  %v801 = vunpack.c.h.b16 %v724
  %v802 = vunpack.c.l.b16 %v725
  %v803 = vunpack.c.h.b16 %v725
  %v804 = vunpack.c.l.b16 %v726
  %v805 = vunpack.c.h.b16 %v726
  %v806 = vunpack.c.l.b16 %v727
  %v807 = vunpack.c.h.b16 %v727
  %v808 = vunpack.c.l.b16 %v728
  %v809 = vunpack.c.h.b16 %v728
  %v810 = vunpack.c.l.b16 %v729
  %v811 = vunpack.c.h.b16 %v729
  %v812 = vunpack.c.l.b16 %v730
  %v813 = vunpack.c.h.b16 %v730
  %v814 = vunpack.c.l.b16 %v731
  %v815 = vunpack.c.h.b16 %v731
  %v816 = vunpack.c.l.b16 %v732
  %v817 = vunpack.c.h.b16 %v732
  %v818 = vunpack.c.l.b16 %v733
  %v819 = vunpack.c.h.b16 %v733
  %v820 = vunpack.c.l.b16 %v734
  %v821 = vunpack.c.h.b16 %v734
  %v822 = vunpack.c.l.b16 %v735
  %v823 = vunpack.c.h.b16 %v735
  %v824 = vunpack.c.l.b16 %v736
  %v825 = vunpack.c.h.b16 %v736
  %v826 = vunpack.c.l.b16 %v737
  %v827 = vunpack.c.h.b16 %v737
  %v828 = vunpack.c.l.b16 %v738
  %v829 = vunpack.c.h.b16 %v738
  %v830 = vunpack.c.l.b16 %v739
  %v831 = vunpack.c.h.b16 %v739
  %v832 = vunpack.c.l.b16 %v740
  %v833 = vunpack.c.h.b16 %v740
  %v834 = vunpack.c.l.b16 %v741
  %v835 = vunpack.c.h.b16 %v741
  %v836 = vunpack.c.l.b16 %v742
  %v837 = vunpack.c.h.b16 %v742
  %v838 = vunpack.c.l.b16 %v743
  %v839 = vunpack.c.h.b16 %v743
  %v840 = vpack.c.b16 %v776, %v776
  %v841 = vpack.c.b16 %v777, %v777
  %v842 = vpack.c.b16 %v778, %v778
  %v843 = vpack.c.b16 %v779, %v779
  %v844 = vpack.c.b16 %v780, %v780
  %v845 = vpack.c.b16 %v781, %v781
  %v846 = vpack.c.b16 %v782, %v782
  %v847 = vpack.c.b16 %v783, %v783
  %v848 = vpack.c.b16 %v784, %v784
  %v849 = vpack.c.b16 %v785, %v785
  %v850 = vpack.c.b16 %v786, %v786
  %v851 = vpack.c.b16 %v787, %v787
  %v852 = vpack.c.b16 %v788, %v788
  %v853 = vpack.c.b16 %v789, %v789
  %v854 = vpack.c.b16 %v790, %v790
  %v855 = vpack.c.b16 %v791, %v791
  %v856 = vpack.c.b16 %v792, %v792
  %v857 = vpack.c.b16 %v793, %v793
  %v858 = vpack.c.b16 %v794, %v794
  %v859 = vpack.c.b16 %v795, %v795
  %v860 = vpack.c.b16 %v796, %v796
  %v861 = vpack.c.b16 %v797, %v797
  %v862 = vpack.c.b16 %v798, %v798
  %v863 = vpack.c.b16 %v799, %v799
  %v864 = vpack.c.b16 %v800, %v800
  %v865 = vpack.c.b16 %v801, %v801
  %v866 = vpack.c.b16 %v802, %v802
  %v867 = vpack.c.b16 %v803, %v803
  %v868 = vpack.c.b16 %v804, %v804
  %v869 = vpack.c.b16 %v805, %v805
  %v870 = vpack.c.b16 %v806, %v806
  %v871 = vpack.c.b16 %v807, %v807
  %v872 = vpack.c.b16 %v808, %v808
  %v873 = vpack.c.b16 %v809, %v809
  %v874 = vpack.c.b16 %v810, %v810
  %v875 = vpack.c.b16 %v811, %v811
  %v876 = vpack.c.b16 %v812, %v812
  %v877 = vpack.c.b16 %v813, %v813
  %v878 = vpack.c.b16 %v814, %v814
  %v879 = vpack.c.b16 %v815, %v815
  %v880 = vpack.c.b16 %v816, %v816
  %v881 = vpack.c.b16 %v817, %v817
  %v882 = vpack.c.b16 %v818, %v818
  %v883 = vpack.c.b16 %v819, %v819
  %v884 = vpack.c.b16 %v820, %v820
  %v885 = vpack.c.b16 %v821, %v821
  %v886 = vpack.c.b16 %v822, %v822
  %v887 = vpack.c.b16 %v823, %v823
  %v888 = vpack.c.b16 %v824, %v824
  %v889 = vpack.c.b16 %v825, %v825
  %v890 = vpack.c.b16 %v826, %v826
  %v891 = vpack.c.b16 %v827, %v827
  %v892 = vpack.c.b16 %v828, %v828
  %v893 = vpack.c.b16 %v829, %v829
  %v894 = vpack.c.b16 %v830, %v830
  %v895 = vpack.c.b16 %v831, %v831
  %v896 = vpack.c.b16 %v832, %v832
  %v897 = vpack.c.b16 %v833, %v833
  %v898 = vpack.c.b16 %v834, %v834
  %v899 = vpack.c.b16 %v835, %v835
  %v900 = vpack.c.b16 %v836, %v836
  %v901 = vpack.c.b16 %v837, %v837
  %v902 = vpack.c.b16 %v838, %v838
  %v903 = vpack.c.b16 %v839, %v839
  %vm968 = vcmask 125952
  %969 = vst.msk [vmem:[%s3] sm:$0xf] %vm968, %v840
  %970 = vst.msk [vmem:[%s3 + $0x4] sm:$0xf] %vm968, %v841
  %971 = vst.msk [vmem:[%s3 + $0x8] sm:$0xf] %vm968, %v842
  %972 = vst.msk [vmem:[%s3 + $0xc] sm:$0xf] %vm968, %v843
  %973 = vst.msk [vmem:[%s3 + $0x10] sm:$0xf] %vm968, %v844
  %974 = vst.msk [vmem:[%s3 + $0x14] sm:$0xf] %vm968, %v845
  %975 = vst.msk [vmem:[%s3 + $0x18] sm:$0xf] %vm968, %v846
  %976 = vst.msk [vmem:[%s3 + $0x1c] sm:$0xf] %vm968, %v847
  %977 = vst.msk [vmem:[%s3 + $0x20] sm:$0xf] %vm968, %v848
  %978 = vst.msk [vmem:[%s3 + $0x24] sm:$0xf] %vm968, %v849
  %979 = vst.msk [vmem:[%s3 + $0x28] sm:$0xf] %vm968, %v850
  %980 = vst.msk [vmem:[%s3 + $0x2c] sm:$0xf] %vm968, %v851
  %981 = vst.msk [vmem:[%s3 + $0x30] sm:$0xf] %vm968, %v852
  %982 = vst.msk [vmem:[%s3 + $0x34] sm:$0xf] %vm968, %v853
  %983 = vst.msk [vmem:[%s3 + $0x38] sm:$0xf] %vm968, %v854
  %984 = vst.msk [vmem:[%s3 + $0x3c] sm:$0xf] %vm968, %v855
  %985 = vst.msk [vmem:[%s3 + $0x40] sm:$0xf] %vm968, %v856
  %986 = vst.msk [vmem:[%s3 + $0x44] sm:$0xf] %vm968, %v857
  %987 = vst.msk [vmem:[%s3 + $0x48] sm:$0xf] %vm968, %v858
  %988 = vst.msk [vmem:[%s3 + $0x4c] sm:$0xf] %vm968, %v859
  %989 = vst.msk [vmem:[%s3 + $0x50] sm:$0xf] %vm968, %v860
  %990 = vst.msk [vmem:[%s3 + $0x54] sm:$0xf] %vm968, %v861
  %991 = vst.msk [vmem:[%s3 + $0x58] sm:$0xf] %vm968, %v862
  %992 = vst.msk [vmem:[%s3 + $0x5c] sm:$0xf] %vm968, %v863
  %993 = vst.msk [vmem:[%s3 + $0x60] sm:$0xf] %vm968, %v864
  %994 = vst.msk [vmem:[%s3 + $0x64] sm:$0xf] %vm968, %v865
  %995 = vst.msk [vmem:[%s3 + $0x68] sm:$0xf] %vm968, %v866
  %996 = vst.msk [vmem:[%s3 + $0x6c] sm:$0xf] %vm968, %v867
  %997 = vst.msk [vmem:[%s3 + $0x70] sm:$0xf] %vm968, %v868
  %998 = vst.msk [vmem:[%s3 + $0x74] sm:$0xf] %vm968, %v869
  %999 = vst.msk [vmem:[%s3 + $0x78] sm:$0xf] %vm968, %v870
  %1000 = vst.msk [vmem:[%s3 + $0x7c] sm:$0xf] %vm968, %v871
  %1001 = vst.msk [vmem:[%s3 + $0x80] sm:$0xf] %vm968, %v872
  %1002 = vst.msk [vmem:[%s3 + $0x84] sm:$0xf] %vm968, %v873
  %1003 = vst.msk [vmem:[%s3 + $0x88] sm:$0xf] %vm968, %v874
  %1004 = vst.msk [vmem:[%s3 + $0x8c] sm:$0xf] %vm968, %v875
  %1005 = vst.msk [vmem:[%s3 + $0x90] sm:$0xf] %vm968, %v876
  %1006 = vst.msk [vmem:[%s3 + $0x94] sm:$0xf] %vm968, %v877
  %1007 = vst.msk [vmem:[%s3 + $0x98] sm:$0xf] %vm968, %v878
  %1008 = vst.msk [vmem:[%s3 + $0x9c] sm:$0xf] %vm968, %v879
  %1009 = vst.msk [vmem:[%s3 + $0xa0] sm:$0xf] %vm968, %v880
  %1010 = vst.msk [vmem:[%s3 + $0xa4] sm:$0xf] %vm968, %v881
  %1011 = vst.msk [vmem:[%s3 + $0xa8] sm:$0xf] %vm968, %v882
  %1012 = vst.msk [vmem:[%s3 + $0xac] sm:$0xf] %vm968, %v883
  %1013 = vst.msk [vmem:[%s3 + $0xb0] sm:$0xf] %vm968, %v884
  %1014 = vst.msk [vmem:[%s3 + $0xb4] sm:$0xf] %vm968, %v885
  %1015 = vst.msk [vmem:[%s3 + $0xb8] sm:$0xf] %vm968, %v886
  %1016 = vst.msk [vmem:[%s3 + $0xbc] sm:$0xf] %vm968, %v887
  %1017 = vst.msk [vmem:[%s3 + $0xc0] sm:$0xf] %vm968, %v888
  %1018 = vst.msk [vmem:[%s3 + $0xc4] sm:$0xf] %vm968, %v889
  %1019 = vst.msk [vmem:[%s3 + $0xc8] sm:$0xf] %vm968, %v890
  %1020 = vst.msk [vmem:[%s3 + $0xcc] sm:$0xf] %vm968, %v891
  %1021 = vst.msk [vmem:[%s3 + $0xd0] sm:$0xf] %vm968, %v892
  %1022 = vst.msk [vmem:[%s3 + $0xd4] sm:$0xf] %vm968, %v893
  %1023 = vst.msk [vmem:[%s3 + $0xd8] sm:$0xf] %vm968, %v894
  %1024 = vst.msk [vmem:[%s3 + $0xdc] sm:$0xf] %vm968, %v895
  %1025 = vst.msk [vmem:[%s3 + $0xe0] sm:$0xf] %vm968, %v896
  %1026 = vst.msk [vmem:[%s3 + $0xe4] sm:$0xf] %vm968, %v897
  %1027 = vst.msk [vmem:[%s3 + $0xe8] sm:$0xf] %vm968, %v898
  %1028 = vst.msk [vmem:[%s3 + $0xec] sm:$0xf] %vm968, %v899
  %1029 = vst.msk [vmem:[%s3 + $0xf0] sm:$0xf] %vm968, %v900
  %1030 = vst.msk [vmem:[%s3 + $0xf4] sm:$0xf] %vm968, %v901
  %1031 = vst.msk [vmem:[%s3 + $0xf8] sm:$0xf] %vm968, %v902
  %1032 = vst.msk [vmem:[%s3 + $0xfc] sm:$0xf] %vm968, %v903
  // Predicated region
  $region14: #{tpu_custom_call.1} parent=0 // pred_check
    _
  $region15: #{tpu_custom_call.1} parent=0 // pred_check_branch
    %1034 = sbr.rel (0) target = $region17
  $region16: #{tpu_custom_call.1} parent=0 // pred_region
    _
  $region17: #{tpu_custom_call.1} parent=0 // pred_fallthru
    _
  // Predicated region
  $region18: #{tpu_custom_call.1} parent=0 // pred_check
    _
  $region19: #{tpu_custom_call.1} parent=0 // pred_check_branch
    %1036 = sbr.rel (0) target = $region21
  $region20: #{tpu_custom_call.1} parent=0 // pred_region
    _
  $region21: #{tpu_custom_call.1} parent=0 // pred_fallthru
    _

</llo_original>
